<compile_context>
chip_gen: v5e
topology: v5e:2x2
jax: 0.10.0
libtpu: 0.0.40
codegen_flags: <defaults>
</compile_context>

<pallas_src>
import math

import jax
import jax.numpy as jnp
from jax.experimental import pallas as pl
from jax.experimental.pallas import tpu as pltpu


def _interp_weights(in_size: int, out_size: int, scale, align_corners: bool):
    """(out_size, in_size) 1-D bilinear interpolation matrix reproducing PyTorch's
    upsample_bilinear2d source-index computation."""
    if align_corners:
        r = (in_size - 1) / (out_size - 1) if out_size > 1 else 0.0
        src = jnp.arange(out_size, dtype=jnp.float32) * jnp.float32(r)
    else:
        # PyTorch: scale = 1/scale_factor if given, else in/out; half-pixel centers.
        r = (1.0 / scale) if scale is not None else (in_size / out_size)
        src = (jnp.arange(out_size, dtype=jnp.float32) + 0.5) * jnp.float32(r) - 0.5
        src = jnp.maximum(src, 0.0)
    low = jnp.clip(jnp.floor(src).astype(jnp.int32), 0, in_size - 1)
    high = jnp.minimum(low + 1, in_size - 1)
    lam = src - low.astype(jnp.float32)
    w = (jax.nn.one_hot(low, in_size, dtype=jnp.float32) * (1.0 - lam)[:, None]
         + jax.nn.one_hot(high, in_size, dtype=jnp.float32) * lam[:, None])
    return w  # (out_size, in_size), float32


def _vmem_params():
    """Generation-aware VMEM block budget / scoped limit / grid-step preferences."""
    try:
        info = pltpu.get_tpu_info()
        vmem_bytes = int(getattr(info, "vmem_capacity_bytes", 64 * 1024 * 1024))
    except Exception:
        vmem_bytes = 64 * 1024 * 1024
    if vmem_bytes >= 100 * 1024 * 1024:
        # v5e / v6e: 128 MiB VMEM, single TensorCore -> fewer, fatter grid steps.
        return dict(budget=56 * 1024 * 1024, limit=100 * 1024 * 1024,
                    min_steps=1, prefer_even_steps=False)
    # v7x-like: 64 MiB physical per TC, 2 TCs share the grid -> conservative budget,
    # prefer an even step count for balanced megacore sharding.
    return dict(budget=20 * 1024 * 1024, limit=48 * 1024 * 1024,
                min_steps=2, prefer_even_steps=True)


def _choose_w_tile(W_out):
    """Tile W_out to bound the f32 intermediate; tiles stay lane-dense (mult of 128)."""
    if W_out <= 512 or W_out % 128 != 0:
        return W_out
    for tw in (512, 384, 256, 128):
        if W_out % tw == 0:
            return tw
    return W_out


def _choose_block_channels(NC, H_in, W_in, H_out, TW, x_itemsize, w_itemsize,
                           budget_bytes, min_steps, prefer_even_steps,
                           max_unroll=64):
    """Largest batch*channel fusion factor BC that (a) keeps blocks legal for the
    (8,128) tiling rule, (b) fits the VMEM budget with correct buffer counts,
    (c) respects the per-generation min-grid-step preference, (d) bounds the
    in-kernel unrolled per-channel loop."""
    def vmem_need(bc):
        return (2 * bc * H_in * W_in * x_itemsize          # double-buffered x block
                + 2 * bc * H_out * TW * x_itemsize         # double-buffered out block
                + (W_in * TW + H_out * H_in) * w_itemsize  # single-buffered weights
                + bc * H_in * TW * 4)                      # f32 intermediate (spill)

    legal = [bc for bc in range(1, NC + 1)
             if NC % bc == 0
             and (bc == NC or ((bc * H_in) % 8 == 0 and (bc * H_out) % 8 == 0))]
    candidates = [bc for bc in legal
                  if bc <= max_unroll
                  and vmem_need(bc) <= budget_bytes
                  and NC // bc >= min(min_steps, NC)]
    if not candidates:
        # TODO(synk): for gigantic spatial sizes even bc=1 can bust the budget;
        # spatial (H) tiling of the block would be needed there.
        small = [bc for bc in legal if bc <= max_unroll] or legal
        return min(small)
    if prefer_even_steps:
        even = [bc for bc in candidates if (NC // bc) % 2 == 0]
        if even:
            return max(even)
    return max(candidates)


def _make_kernel(BC, H_in, H_out):
    def kernel(x_ref, ww_ref, wh_ref, o_ref):
        # x_ref : (BC*H_in, W_in)   batch*channels fused into the matmul M dim
        # ww_ref: (W_in, TW)        W-axis interpolation weights (transposed)
        # wh_ref: (H_out, H_in)     H-axis interpolation weights (shared, constant)
        # o_ref : (BC*H_out, TW)
        tmp = jnp.dot(x_ref[...], ww_ref[...], preferred_element_type=jnp.float32)
        tmp = tmp.astype(wh_ref.dtype)
        wh = wh_ref[...]
        # Per-channel H-pass: only the useful MACs (no block-diagonal waste);
        # static unroll (BC bounded by the chooser), stores already NCHW-ordered.
        for c in range(BC):
            out_c = jnp.dot(wh, tmp[c * H_in:(c + 1) * H_in, :],
                            preferred_element_type=jnp.float32)
            o_ref[c * H_out:(c + 1) * H_out, :] = out_c.astype(o_ref.dtype)
    return kernel


def interpolate_bilinear(x, size=None, scale_factor=None, align_corners=False):
    """Pallas TPU equivalent of
    F.interpolate(x, size, scale_factor, mode='bilinear', align_corners=...)
    for NCHW float inputs."""
    N, C, H_in, W_in = x.shape

    # Resolve output size / per-axis scales exactly like PyTorch.
    if size is not None:
        if isinstance(size, int):
            H_out, W_out = size, size
        else:
            H_out, W_out = size
        sh = sw = None
    else:
        if isinstance(scale_factor, (int, float)):
            sfh = sfw = float(scale_factor)
        else:
            sfh, sfw = (float(s) for s in scale_factor)
        H_out, W_out = int(math.floor(H_in * sfh)), int(math.floor(W_in * sfw))
        sh, sw = sfh, sfw

    # bf16 inputs -> bf16 MXU operands (f32 accumulation); f32 inputs stay f32.
    compute_dtype = jnp.bfloat16 if x.dtype == jnp.bfloat16 else jnp.float32
    wh = _interp_weights(H_in, H_out, sh, align_corners).astype(compute_dtype)
    ww_t = _interp_weights(W_in, W_out, sw, align_corners).T.astype(compute_dtype)

    NC = N * C
    x2 = x.reshape(NC * H_in, W_in)               # free: contiguous, last dim kept

    params = _vmem_params()
    TW = _choose_w_tile(W_out)
    n_w_tiles = W_out // TW
    x_itemsize = jnp.dtype(x.dtype).itemsize
    w_itemsize = jnp.dtype(compute_dtype).itemsize
    BC = _choose_block_channels(NC, H_in, W_in, H_out, TW, x_itemsize, w_itemsize,
                                params["budget"], params["min_steps"],
                                params["prefer_even_steps"])
    grid = (NC // BC, n_w_tiles)

    kernel = _make_kernel(BC, H_in, H_out)

    # Executed MACs only: W-pass + per-channel H-pass (no kron over-count).
    cost = pl.CostEstimate(
        flops=2 * NC * H_in * W_out * (W_in + H_out),
        transcendentals=0,
        bytes_accessed=(NC * H_in * W_in * x_itemsize
                        + NC * H_out * W_out * x_itemsize
                        + grid[0] * grid[1] * (W_in * TW + H_out * H_in) * w_itemsize),
    )

    def build(single_buffer_weights):
        def wspec(shape, index_map, constant):
            if single_buffer_weights and constant:
                # Constant-index weight blocks don't need double buffering.
                return pl.BlockSpec(shape, index_map, pipeline_mode=pl.Buffered(1))
            return pl.BlockSpec(shape, index_map)

        return pl.pallas_call(
            kernel,
            out_shape=jax.ShapeDtypeStruct((NC * H_out, W_out), x.dtype),
            grid_spec=pltpu.PrefetchScalarGridSpec(
                num_scalar_prefetch=0,
                grid=grid,
                in_specs=[
                    pl.BlockSpec((BC * H_in, W_in), lambda i, j: (i, 0)),
                    wspec((W_in, TW), lambda i, j: (0, j),
                          constant=(n_w_tiles == 1)),
                    wspec((H_out, H_in), lambda i, j: (0, 0), constant=True),
                ],
                out_specs=pl.BlockSpec((BC * H_out, TW), lambda i, j: (i, j)),
            ),
            compiler_params=pltpu.CompilerParams(
                dimension_semantics=("parallel", "arbitrary"),
                vmem_limit_bytes=params["limit"],
            ),
            cost_estimate=cost,
        )

    try:
        out2 = build(True)(x2, ww_t, wh)
    except Exception:
        # TODO(synk): this jax version rejected Buffered(1) single-buffering of the
        # constant weight inputs; fall back to default double-buffering (same math).
        out2 = build(False)(x2, ww_t, wh)

    return out2.reshape(N, C, H_out, W_out)       # free: contiguous leading split


if __name__ == "__main__":
    key = jax.random.PRNGKey(0)
    # Module instance equivalent: Interpolate(scale_factor=2.0, mode='bilinear',
    # align_corners=False), NCHW input.
    x = jax.random.normal(key, (2, 4, 16, 16), dtype=jnp.float32)

    out = interpolate_bilinear(x, scale_factor=2.0, align_corners=False)
    out = jax.block_until_ready(out)
    assert out.shape == (2, 4, 32, 32), out.shape

    # Pure-JAX reference using the same (PyTorch-exact) weight matrices.
    wh_ref = _interp_weights(16, 32, 2.0, False)
    ww_ref = _interp_weights(16, 32, 2.0, False)
    ref = jnp.einsum("oh,nchw,pw->ncop", wh_ref, x, ww_ref)
    assert jnp.allclose(out, ref, atol=1e-5, rtol=1e-5)

    print("KERNEL_OK")
</pallas_src>

<mosaic_0001>
module attributes {stable_mosaic.version = 11 : i64} {
  func.func @kernel(%arg0: i32, %arg1: i32, %arg2: memref<64x16xf32, #tpu.memory_space<vmem>>, %arg3: memref<16x32xf32, #tpu.memory_space<vmem>>, %arg4: memref<32x16xf32, #tpu.memory_space<vmem>>, %arg5: memref<128x32xf32, #tpu.memory_space<vmem>>) attributes {dimension_semantics = [#tpu.dimension_semantics<parallel>, #tpu.dimension_semantics<arbitrary>], iteration_bounds = array<i64: 2, 1>, scalar_prefetch = 0 : i64, scratch_operands = 0 : i64, tpu.core_type = #tpu.core_type<tc>, window_params = [{transform_indices = @transform_0, window_bounds = array<i64: 64, 16>}, {pipeline_mode = #tpu.pipeline_mode<synchronous>, transform_indices = @transform_1, window_bounds = array<i64: 16, 32>}, {pipeline_mode = #tpu.pipeline_mode<synchronous>, transform_indices = @transform_2, window_bounds = array<i64: 32, 16>}, {transform_indices = @transform_3, window_bounds = array<i64: 128, 32>}]} {
    %c0 = arith.constant 0 : index
    %c0_0 = arith.constant 0 : index
    %0 = vector.load %arg2[%c0, %c0_0] : memref<64x16xf32, #tpu.memory_space<vmem>>, vector<64x16xf32>
    %c0_1 = arith.constant 0 : index
    %c0_2 = arith.constant 0 : index
    %1 = vector.load %arg3[%c0_1, %c0_2] : memref<16x32xf32, #tpu.memory_space<vmem>>, vector<16x32xf32>
    %cst = arith.constant dense<0.000000e+00> : vector<64x32xf32>
    %2 = tpu.matmul %0, %1, %cst {dimension_numbers = #tpu.dot_dimension_numbers<[1], [0], [0], [1], [0, 0, 1, 1], [], []>} : vector<64x16xf32>, vector<16x32xf32>, vector<64x32xf32> -> vector<64x32xf32>
    %c0_3 = arith.constant 0 : index
    %c0_4 = arith.constant 0 : index
    %3 = vector.load %arg4[%c0_3, %c0_4] : memref<32x16xf32, #tpu.memory_space<vmem>>, vector<32x16xf32>
    %4 = vector.extract_strided_slice %2 {offsets = [0, 0], sizes = [16, 32], strides = [1, 1]} : vector<64x32xf32> to vector<16x32xf32>
    %cst_5 = arith.constant dense<0.000000e+00> : vector<32x32xf32>
    %5 = tpu.matmul %3, %4, %cst_5 {dimension_numbers = #tpu.dot_dimension_numbers<[1], [0], [0], [1], [0, 0, 1, 1], [], []>} : vector<32x16xf32>, vector<16x32xf32>, vector<32x32xf32> -> vector<32x32xf32>
    %c0_6 = arith.constant 0 : index
    %c0_7 = arith.constant 0 : index
    %6 = vector.load %arg5[%c0_6, %c0_7] : memref<128x32xf32, #tpu.memory_space<vmem>>, vector<32x32xf32>
    tpu.vector_store %arg5[%c0_6, %c0_7], %5 {strides = array<i32>} : memref<128x32xf32, #tpu.memory_space<vmem>>, vector<32x32xf32>,
    %7 = vector.extract_strided_slice %2 {offsets = [16, 0], sizes = [16, 32], strides = [1, 1]} : vector<64x32xf32> to vector<16x32xf32>
    %cst_8 = arith.constant dense<0.000000e+00> : vector<32x32xf32>
    %8 = tpu.matmul %3, %7, %cst_8 {dimension_numbers = #tpu.dot_dimension_numbers<[1], [0], [0], [1], [0, 0, 1, 1], [], []>} : vector<32x16xf32>, vector<16x32xf32>, vector<32x32xf32> -> vector<32x32xf32>
    %c32 = arith.constant 32 : index
    %c0_9 = arith.constant 0 : index
    %9 = vector.load %arg5[%c32, %c0_9] : memref<128x32xf32, #tpu.memory_space<vmem>>, vector<32x32xf32>
    tpu.vector_store %arg5[%c32, %c0_9], %8 {strides = array<i32>} : memref<128x32xf32, #tpu.memory_space<vmem>>, vector<32x32xf32>,
    %10 = vector.extract_strided_slice %2 {offsets = [32, 0], sizes = [16, 32], strides = [1, 1]} : vector<64x32xf32> to vector<16x32xf32>
    %cst_10 = arith.constant dense<0.000000e+00> : vector<32x32xf32>
    %11 = tpu.matmul %3, %10, %cst_10 {dimension_numbers = #tpu.dot_dimension_numbers<[1], [0], [0], [1], [0, 0, 1, 1], [], []>} : vector<32x16xf32>, vector<16x32xf32>, vector<32x32xf32> -> vector<32x32xf32>
    %c64 = arith.constant 64 : index
    %c0_11 = arith.constant 0 : index
    %12 = vector.load %arg5[%c64, %c0_11] : memref<128x32xf32, #tpu.memory_space<vmem>>, vector<32x32xf32>
    tpu.vector_store %arg5[%c64, %c0_11], %11 {strides = array<i32>} : memref<128x32xf32, #tpu.memory_space<vmem>>, vector<32x32xf32>,
    %13 = vector.extract_strided_slice %2 {offsets = [48, 0], sizes = [16, 32], strides = [1, 1]} : vector<64x32xf32> to vector<16x32xf32>
    %cst_12 = arith.constant dense<0.000000e+00> : vector<32x32xf32>
    %14 = tpu.matmul %3, %13, %cst_12 {dimension_numbers = #tpu.dot_dimension_numbers<[1], [0], [0], [1], [0, 0, 1, 1], [], []>} : vector<32x16xf32>, vector<16x32xf32>, vector<32x32xf32> -> vector<32x32xf32>
    %c96 = arith.constant 96 : index
    %c0_13 = arith.constant 0 : index
    %15 = vector.load %arg5[%c96, %c0_13] : memref<128x32xf32, #tpu.memory_space<vmem>>, vector<32x32xf32>
    tpu.vector_store %arg5[%c96, %c0_13], %14 {strides = array<i32>} : memref<128x32xf32, #tpu.memory_space<vmem>>, vector<32x32xf32>,
    return
  }
  func.func @transform_0(%arg0: i32, %arg1: i32) -> (i32, i32) {
    %c0_i32 = arith.constant 0 : i32
    %c0_i32_0 = arith.constant 0 : i32
    return %arg0, %c0_i32 : i32, i32
  }
  func.func @transform_1(%arg0: i32, %arg1: i32) -> (i32, i32) {
    %c0_i32 = arith.constant 0 : i32
    %c0_i32_0 = arith.constant 0 : i32
    return %c0_i32, %arg1 : i32, i32
  }
  func.func @transform_2(%arg0: i32, %arg1: i32) -> (i32, i32) {
    %c0_i32 = arith.constant 0 : i32
    %c0_i32_0 = arith.constant 0 : i32
    %c0_i32_1 = arith.constant 0 : i32
    return %c0_i32, %c0_i32_0 : i32, i32
  }
  func.func @transform_3(%arg0: i32, %arg1: i32) -> (i32, i32) {
    %c0_i32 = arith.constant 0 : i32
    return %arg0, %arg1 : i32, i32
  }
}

module attributes {stable_mosaic.version = 11 : i64} {
  func.func @kernel(%arg0: i32, %arg1: i32, %arg2: memref<64x16xf32, #tpu.memory_space<vmem>>, %arg3: memref<16x32xf32, #tpu.memory_space<vmem>>, %arg4: memref<32x16xf32, #tpu.memory_space<vmem>>, %arg5: memref<128x32xf32, #tpu.memory_space<vmem>>) attributes {dimension_semantics = [#tpu.dimension_semantics<parallel>, #tpu.dimension_semantics<arbitrary>], iteration_bounds = array<i64: 2, 1>, scalar_prefetch = 0 : i64, scratch_operands = 0 : i64, tpu.core_type = #tpu.core_type<tc>, window_params = [{transform_indices = @transform_0, window_bounds = array<i64: 64, 16>}, {transform_indices = @transform_1, window_bounds = array<i64: 16, 32>}, {pipeline_mode = #tpu.pipeline_mode<synchronous>, transform_indices = @transform_2, window_bounds = array<i64: 32, 16>}, {transform_indices = @transform_3, window_bounds = array<i64: 128, 32>}]} {
    %c0 = arith.constant 0 : index
    %c0_0 = arith.constant 0 : index
    %0 = vector.load %arg2[%c0, %c0_0] : memref<64x16xf32, #tpu.memory_space<vmem>>, vector<64x16xf32>
    %c0_1 = arith.constant 0 : index
    %c0_2 = arith.constant 0 : index
    %1 = vector.load %arg3[%c0_1, %c0_2] : memref<16x32xf32, #tpu.memory_space<vmem>>, vector<16x32xf32>
    %cst = arith.constant dense<0.000000e+00> : vector<64x32xf32>
    %2 = tpu.matmul %0, %1, %cst {dimension_numbers = #tpu.dot_dimension_numbers<[1], [0], [0], [1], [0, 0, 1, 1], [], []>} : vector<64x16xf32>, vector<16x32xf32>, vector<64x32xf32> -> vector<64x32xf32>
    %c0_3 = arith.constant 0 : index
    %c0_4 = arith.constant 0 : index
    %3 = vector.load %arg4[%c0_3, %c0_4] : memref<32x16xf32, #tpu.memory_space<vmem>>, vector<32x16xf32>
    %4 = vector.extract_strided_slice %2 {offsets = [0, 0], sizes = [16, 32], strides = [1, 1]} : vector<64x32xf32> to vector<16x32xf32>
    %cst_5 = arith.constant dense<0.000000e+00> : vector<32x32xf32>
    %5 = tpu.matmul %3, %4, %cst_5 {dimension_numbers = #tpu.dot_dimension_numbers<[1], [0], [0], [1], [0, 0, 1, 1], [], []>} : vector<32x16xf32>, vector<16x32xf32>, vector<32x32xf32> -> vector<32x32xf32>
    %c0_6 = arith.constant 0 : index
    %c0_7 = arith.constant 0 : index
    %6 = vector.load %arg5[%c0_6, %c0_7] : memref<128x32xf32, #tpu.memory_space<vmem>>, vector<32x32xf32>
    tpu.vector_store %arg5[%c0_6, %c0_7], %5 {strides = array<i32>} : memref<128x32xf32, #tpu.memory_space<vmem>>, vector<32x32xf32>,
    %7 = vector.extract_strided_slice %2 {offsets = [16, 0], sizes = [16, 32], strides = [1, 1]} : vector<64x32xf32> to vector<16x32xf32>
    %cst_8 = arith.constant dense<0.000000e+00> : vector<32x32xf32>
    %8 = tpu.matmul %3, %7, %cst_8 {dimension_numbers = #tpu.dot_dimension_numbers<[1], [0], [0], [1], [0, 0, 1, 1], [], []>} : vector<32x16xf32>, vector<16x32xf32>, vector<32x32xf32> -> vector<32x32xf32>
    %c32 = arith.constant 32 : index
    %c0_9 = arith.constant 0 : index
    %9 = vector.load %arg5[%c32, %c0_9] : memref<128x32xf32, #tpu.memory_space<vmem>>, vector<32x32xf32>
    tpu.vector_store %arg5[%c32, %c0_9], %8 {strides = array<i32>} : memref<128x32xf32, #tpu.memory_space<vmem>>, vector<32x32xf32>,
    %10 = vector.extract_strided_slice %2 {offsets = [32, 0], sizes = [16, 32], strides = [1, 1]} : vector<64x32xf32> to vector<16x32xf32>
    %cst_10 = arith.constant dense<0.000000e+00> : vector<32x32xf32>
    %11 = tpu.matmul %3, %10, %cst_10 {dimension_numbers = #tpu.dot_dimension_numbers<[1], [0], [0], [1], [0, 0, 1, 1], [], []>} : vector<32x16xf32>, vector<16x32xf32>, vector<32x32xf32> -> vector<32x32xf32>
    %c64 = arith.constant 64 : index
    %c0_11 = arith.constant 0 : index
    %12 = vector.load %arg5[%c64, %c0_11] : memref<128x32xf32, #tpu.memory_space<vmem>>, vector<32x32xf32>
    tpu.vector_store %arg5[%c64, %c0_11], %11 {strides = array<i32>} : memref<128x32xf32, #tpu.memory_space<vmem>>, vector<32x32xf32>,
    %13 = vector.extract_strided_slice %2 {offsets = [48, 0], sizes = [16, 32], strides = [1, 1]} : vector<64x32xf32> to vector<16x32xf32>
    %cst_12 = arith.constant dense<0.000000e+00> : vector<32x32xf32>
    %14 = tpu.matmul %3, %13, %cst_12 {dimension_numbers = #tpu.dot_dimension_numbers<[1], [0], [0], [1], [0, 0, 1, 1], [], []>} : vector<32x16xf32>, vector<16x32xf32>, vector<32x32xf32> -> vector<32x32xf32>
    %c96 = arith.constant 96 : index
    %c0_13 = arith.constant 0 : index
    %15 = vector.load %arg5[%c96, %c0_13] : memref<128x32xf32, #tpu.memory_space<vmem>>, vector<32x32xf32>
    tpu.vector_store %arg5[%c96, %c0_13], %14 {strides = array<i32>} : memref<128x32xf32, #tpu.memory_space<vmem>>, vector<32x32xf32>,
    return
  }
  func.func @transform_0(%arg0: i32, %arg1: i32) -> (i32, i32) {
    %c0_i32 = arith.constant 0 : i32
    %c0_i32_0 = arith.constant 0 : i32
    return %arg0, %c0_i32 : i32, i32
  }
  func.func @transform_1(%arg0: i32, %arg1: i32) -> (i32, i32) {
    %c0_i32 = arith.constant 0 : i32
    %c0_i32_0 = arith.constant 0 : i32
    return %c0_i32, %arg1 : i32, i32
  }
  func.func @transform_2(%arg0: i32, %arg1: i32) -> (i32, i32) {
    %c0_i32 = arith.constant 0 : i32
    %c0_i32_0 = arith.constant 0 : i32
    %c0_i32_1 = arith.constant 0 : i32
    return %c0_i32, %c0_i32_0 : i32, i32
  }
  func.func @transform_3(%arg0: i32, %arg1: i32) -> (i32, i32) {
    %c0_i32 = arith.constant 0 : i32
    return %arg0, %arg1 : i32, i32
  }
}

</mosaic_0001>

<llo_original>
// kernel: tpu_custom_call.1
$region0: #{tpu_custom_call.1}
  #allocation0 [shape = 'u32[]', space=smem, size = 0x4, offset = 0x4, fixed_abs, tag = 'smem constant byte address 0x4 - core index']
  #allocation1 [shape = 'u32[72,128]{1,0:T(1,128)}', space=vmem, size = 0x9000, scoped, tag = 'internal scratch']
  %s0 = inlined_call_operand.vmem [shape: f32[128,16], index: 0, kind: input, shape index: {}]
  %s1 = inlined_call_operand.vmem [shape: f32[16,32], index: 1, kind: input, shape index: {}]
  %s2 = inlined_call_operand.vmem [shape: f32[32,16], index: 2, kind: input, shape index: {}]
  %s3 = inlined_call_operand.vmem [shape: f32[256,32], index: 3, kind: output, shape index: {}]
  %s4 = sld [smem:[#allocation0]]
  $region45: #{tpu_custom_call.1} parent=0
    _
  %s6 = ssub.s32 1, %s4
  %s7 = scalar_select 0, %s6, %s4
  loop: start=0, step=1, limit=4
  $region2: #{tpu_custom_call.1} parent=0 // loop_pre_header
    _
  $region3: #{tpu_custom_call.1} parent=0 // loop_header
    %s9 = sphi 0, %s13
    %p10 = scmp.ge.s32.totalorder %s9, 4
    %s16 = sphi 0, %s28
    %s17 = sphi 0, %s24
    %s18 = sphi 0, %s16
    %s19 = sphi 0, %s17
    %s20 = sphi 0, %s18
    %s21 = sphi 0, %s19
    %s31 = sphi 0, %s33
    %s34 = sphi 0, %s31
    %s35 = sphi 0, %s34
    %s51 = sphi 0, %s35
    %s57 = sphi 0, %s59
    %s60 = sphi 0, %s57
    %s61 = sphi 0, %s60
    %s77 = sphi 0, %s61
    %s81 = sphi 0, %s81
    %s83 = sphi 0, %s81
    %s84 = sphi 0, %s83
    %s98 = sphi 0, %s84
    %s106 = sphi 0, %s108
    %s109 = sphi 0, %s106
    %s110 = sphi 0, %s109
    %s126 = sphi 0, %s110
  $region4: #{tpu_custom_call.1} parent=0 // loop_header_branch
    %12 = sbr.rel (%p10) target = $region8
  $region5: #{tpu_custom_call.1} parent=0 // loop_body
    %s14 = ssub.s32 %s9, 1
    %s15 = ssub.s32 %s9, 2
    %s22 = sadd.s32 1, %s17
    %p23 = scmp.ge.s32.totalorder %s22, 1
    %s24 = scalar_select %p23, 0, %s22
    %s25 = sadd.s32 1, %s16
    %s26 = scalar_select %p23, %s25, %s16
    %p27 = scmp.ge.s32.totalorder %s26, 2
    %s28 = scalar_select %p27, 0, %s26
    %s29 = ssub.s32 %s16, %s28
    %p30 = scmp.eq.s32.totalorder %s29, 0
    %s32 = sadd.s32 %s31, 1
    %s33 = scalar_select %p30, %s31, %s32
    %p36 = pneg %p30
    %p37 = scmp.eq.s32.totalorder %s9, 1
    %p38 = por %p36, %p37
    %p39 = scmp.ne.s32.totalorder %s31, %s34
    %p40 = scmp.eq.s32.totalorder %s9, 0
    %p41 = por %p39, %p40
    %p42 = scmp.ne.s32.totalorder %s31, %s34
    %p43 = scmp.eq.s32.totalorder %s14, 1
    %p44 = por %p42, %p43
    %p45 = scmp.ne.s32.totalorder %s34, %s35
    %p46 = scmp.eq.s32.totalorder %s14, 0
    %p47 = por %p45, %p46
    %p48 = scmp.ne.s32.totalorder %s34, %s35
    %p49 = scmp.eq.s32.totalorder %s15, 1
    %p50 = por %p48, %p49
    %p52 = scmp.ne.s32.totalorder %s35, %s51
    %p53 = scmp.eq.s32.totalorder %s15, 0
    %p54 = por %p52, %p53
    %s55 = ssub.s32 %s17, %s24
    %p56 = scmp.eq.s32.totalorder %s55, 0
    %s58 = sadd.s32 %s57, 1
    %s59 = scalar_select %p56, %s57, %s58
    %p62 = pneg %p56
    %p63 = scmp.eq.s32.totalorder %s9, 1
    %p64 = por %p62, %p63
    %p65 = scmp.ne.s32.totalorder %s57, %s60
    %p66 = scmp.eq.s32.totalorder %s9, 0
    %p67 = por %p65, %p66
    %p68 = scmp.ne.s32.totalorder %s57, %s60
    %p69 = scmp.eq.s32.totalorder %s14, 1
    %p70 = por %p68, %p69
    %p71 = scmp.ne.s32.totalorder %s60, %s61
    %p72 = scmp.eq.s32.totalorder %s14, 0
    %p73 = por %p71, %p72
    %p74 = scmp.ne.s32.totalorder %s60, %s61
    %p75 = scmp.eq.s32.totalorder %s15, 1
    %p76 = por %p74, %p75
    %p78 = scmp.ne.s32.totalorder %s61, %s77
    %p79 = scmp.eq.s32.totalorder %s15, 0
    %p80 = por %p78, %p79
    %s82 = sadd.s32 %s81, 1
    %p85 = scmp.eq.s32.totalorder %s9, 1
    %p86 = scmp.ne.s32.totalorder %s81, %s83
    %p87 = scmp.eq.s32.totalorder %s9, 0
    %p88 = por %p86, %p87
    %p89 = scmp.ne.s32.totalorder %s81, %s83
    %p90 = scmp.eq.s32.totalorder %s14, 1
    %p91 = por %p89, %p90
    %p92 = scmp.ne.s32.totalorder %s83, %s84
    %p93 = scmp.eq.s32.totalorder %s14, 0
    %p94 = por %p92, %p93
    %p95 = scmp.ne.s32.totalorder %s83, %s84
    %p96 = scmp.eq.s32.totalorder %s15, 1
    %p97 = por %p95, %p96
    %p99 = scmp.ne.s32.totalorder %s84, %s98
    %p100 = scmp.eq.s32.totalorder %s15, 0
    %p101 = por %p99, %p100
    %s102 = ssub.s32 %s16, %s28
    %s103 = ssub.s32 %s17, %s24
    %s104 = sor.u32 %s102, %s103
    %p105 = scmp.eq.s32.totalorder %s104, 0
    %s107 = sadd.s32 %s106, 1
    %s108 = scalar_select %p105, %s106, %s107
    %p111 = pneg %p105
    %p112 = scmp.eq.s32.totalorder %s9, 1
    %p113 = por %p111, %p112
    %p114 = scmp.ne.s32.totalorder %s106, %s109
    %p115 = scmp.eq.s32.totalorder %s9, 0
    %p116 = por %p114, %p115
    %p117 = scmp.ne.s32.totalorder %s106, %s109
    %p118 = scmp.eq.s32.totalorder %s14, 1
    %p119 = por %p117, %p118
    %p120 = scmp.ne.s32.totalorder %s109, %s110
    %p121 = scmp.eq.s32.totalorder %s14, 0
    %p122 = por %p120, %p121
    %p123 = scmp.ne.s32.totalorder %s109, %s110
    %p124 = scmp.eq.s32.totalorder %s15, 1
    %p125 = por %p123, %p124
    %p127 = scmp.ne.s32.totalorder %s110, %s126
    %p128 = scmp.eq.s32.totalorder %s15, 0
    %p129 = por %p127, %p128
    %p130 = scmp.le.s32.totalorder 1, %s9
    %p131 = scmp.lt.s32.totalorder %s9, 3
    %p132 = pnand %p130, %p131
    %p133 = pneg %p132
    // Predicated region
    $region9: #{tpu_custom_call.1} parent=5 // pred_check
      _
    $region10: #{tpu_custom_call.1} parent=5 // pred_check_branch
      %135 = sbr.rel (%p132) target = $region12
    $region11: #{tpu_custom_call.1} parent=5 // pred_region
      %s136 = ssub.s32 %s9, 1
      // Predicated region
      $region13: #{tpu_custom_call.1} parent=11 // pred_check
        %p137 = pneg %p73
      $region14: #{tpu_custom_call.1} parent=11 // pred_check_branch
        %139 = sbr.rel (%p137) target = $region16
      $region15: #{tpu_custom_call.1} parent=11 // pred_region
        %p140 = scmp.lt.s32.totalorder %s19, 0
        %s141 = scalar_select %p140, %s19, 0
        %s142 = smul.addr %s141, 8
        %s143 = scalar_lea.vmem %s1, %s142
      $region16: #{tpu_custom_call.1} parent=11 // pred_fallthru
        _
      // Predicated region
      $region17: #{tpu_custom_call.1} parent=11 // pred_check
        %p144 = pneg %p94
      $region18: #{tpu_custom_call.1} parent=11 // pred_check_branch
        %146 = sbr.rel (%p144) target = $region20
      $region19: #{tpu_custom_call.1} parent=11 // pred_region
        _
      $region20: #{tpu_custom_call.1} parent=11 // pred_fallthru
        _
    $region12: #{tpu_custom_call.1} parent=5 // pred_fallthru
      _
    %p147 = scmp.lt.s32.totalorder %s9, 2
    // Predicated region
    $region21: #{tpu_custom_call.1} parent=5 // pred_check
      %p148 = pneg %p147
    $region22: #{tpu_custom_call.1} parent=5 // pred_check_branch
      %150 = sbr.rel (%p148) target = $region24
    $region23: #{tpu_custom_call.1} parent=5 // pred_region
      // Predicated region
      $region25: #{tpu_custom_call.1} parent=23 // pred_check
        %p151 = pneg %p41
      $region26: #{tpu_custom_call.1} parent=23 // pred_check_branch
        %153 = sbr.rel (%p151) target = $region28
      $region27: #{tpu_custom_call.1} parent=23 // pred_region
        %s154 = smul.u32 8, %s16
        %p155 = scmp.lt.s32.totalorder %s154, 15
        %s156 = scalar_select %p155, %s154, 15
        %s157 = smul.addr %s156, 8
        %s158 = scalar_lea.vmem %s0, %s157
        %s159 = smul.u32 8, %s16
      $region28: #{tpu_custom_call.1} parent=23 // pred_fallthru
        _
    $region24: #{tpu_custom_call.1} parent=5 // pred_fallthru
      _
    %p160 = scmp.le.s32.totalorder 1, %s9
    %p161 = scmp.lt.s32.totalorder %s9, 3
    %p162 = pnand %p160, %p161
    %p163 = pneg %p162
    // Predicated region
    $region29: #{tpu_custom_call.1} parent=5 // pred_check
      _
    $region30: #{tpu_custom_call.1} parent=5 // pred_check_branch
      %165 = sbr.rel (%p162) target = $region32
    $region31: #{tpu_custom_call.1} parent=5 // pred_region
      %s166 = ssub.s32 %s9, 1
      %s167 = smul.u32 8, %s18
      %p168 = scmp.lt.s32.totalorder %s167, 15
      %s169 = scalar_select %p168, %s167, 15
      %s170 = smul.addr %s169, 8
      %s171 = scalar_lea.vmem %s0, %s170
      %p172 = pneg %p47
      %p173 = pneg %p44
      %p174 = scmp.lt.s32.totalorder %s19, 0
      %s175 = scalar_select %p174, %s19, 0
      %s176 = smul.addr %s175, 8
      %s177 = scalar_lea.vmem %s1, %s176
      %p178 = pneg %p73
      %p179 = pneg %p70
      %p180 = pneg %p94
      %p181 = pneg %p91
      %p182 = pneg %p122
      %p183 = pneg %p119
      %s184 = smul.u32 16, %s18
      %p185 = scmp.lt.s32.totalorder %s184, 31
      %s186 = scalar_select %p185, %s184, 31
      %p187 = scmp.lt.s32.totalorder %s19, 0
      %s188 = scalar_select %p187, %s19, 0
      %s189 = sadd.s32 %s188, %s186
      %s190 = smul.addr %s189, 8
      %s191 = scalar_lea.vmem %s3, %s190
      %s192 = smul.u32 8, %s18
      %p193 = scmp.lt.s32.totalorder %s192, 15
      %s194 = scalar_select %p193, %s192, 15
      %s195 = smul.addr %s194, 8
      %s196 = scalar_lea.vmem %s0, %s195
      %s197 = smul.u32 8, %s18
      %p198 = scmp.lt.s32.totalorder %s19, 0
      %s199 = scalar_select %p198, %s19, 0
      %s200 = smul.addr %s199, 8
      %s201 = scalar_lea.vmem %s1, %s200
      %s202 = smul.u32 16, %s18
      %p203 = scmp.lt.s32.totalorder %s202, 31
      %s204 = scalar_select %p203, %s202, 31
      %p205 = scmp.lt.s32.totalorder %s19, 0
      %s206 = scalar_select %p205, %s19, 0
      %s207 = sadd.s32 %s206, %s204
      %s208 = smul.addr %s207, 8
      %s209 = scalar_lea.vmem %s3, %s208
      %s210 = smul.u32 16, %s18
      %v211 = vld [vmem:[%s196] sm:$0xff]
      %v212 = vld [vmem:[%s196 + $0x8] sm:$0xff]
      %v213 = vld [vmem:[%s196 + $0x10] sm:$0xff]
      %v214 = vld [vmem:[%s196 + $0x18] sm:$0xff]
      %v215 = vld [vmem:[%s196 + $0x20] sm:$0xff]
      %v216 = vld [vmem:[%s196 + $0x28] sm:$0xff]
      %v217 = vld [vmem:[%s196 + $0x30] sm:$0xff]
      %v218 = vld [vmem:[%s196 + $0x38] sm:$0xff]
      %v219 = vld [vmem:[%s201] sm:$0xff]
      %v220 = vld [vmem:[%s201 + $0x8] sm:$0xff]
      %vm221 = vcmask 130048
      %v223 = vsel %vm221, %v211, 0
      %v226 = vsel %vm221, %v212, 0
      %v229 = vsel %vm221, %v213, 0
      %v232 = vsel %vm221, %v214, 0
      %v235 = vsel %vm221, %v215, 0
      %v238 = vsel %vm221, %v216, 0
      %v241 = vsel %vm221, %v217, 0
      %v244 = vsel %vm221, %v218, 0
      %246 = vmatpush.msra.mxu0 0.0
      %247 = vmatpush.msra.mxu0 0.0
      %248 = vmatpush.msra.mxu0 0.0
      %249 = vmatpush.msra.mxu0 0.0
      %250 = vmatpush.msra.mxu0 0.0
      %251 = vmatpush.msra.mxu0 0.0
      %252 = vmatpush.msra.mxu0 0.0
      %253 = vmatpush.msra.mxu0 0.0
      %254 = vmatpush.msra.mxu0 0.0
      %255 = vmatpush.msra.mxu0 0.0
      %256 = vmatpush.msra.mxu0 0.0
      %257 = vmatpush.msra.mxu0 0.0
      %258 = vmatpush.msra.mxu0 0.0
      %259 = vmatpush.msra.mxu0 0.0
      %260 = vmatpush.msra.mxu0 %v220
      %261 = vmatpush.msra.mxu0 %v219
      %262 = vmatmul.f32.gmra.mxu0 %v223
      %v263 = vpop.f32.mrf.mxu0
      %v264 = vadd.f32 0.0, %v263
      %265 = vmatmul.f32.gmra.mxu0 %v226
      %v266 = vpop.f32.mrf.mxu0
      %v267 = vadd.f32 0.0, %v266
      %268 = vmatmul.f32.gmra.mxu0 %v229
      %v269 = vpop.f32.mrf.mxu0
      %v270 = vadd.f32 0.0, %v269
      %271 = vmatmul.f32.gmra.mxu0 %v232
      %v272 = vpop.f32.mrf.mxu0
      %v273 = vadd.f32 0.0, %v272
      %274 = vmatmul.f32.gmra.mxu0 %v235
      %v275 = vpop.f32.mrf.mxu0
      %v276 = vadd.f32 0.0, %v275
      %277 = vmatmul.f32.gmra.mxu0 %v238
      %v278 = vpop.f32.mrf.mxu0
      %v279 = vadd.f32 0.0, %v278
      %280 = vmatmul.f32.gmra.mxu0 %v241
      %v281 = vpop.f32.mrf.mxu0
      %v282 = vadd.f32 0.0, %v281
      %283 = vmatmul.f32.gmra.mxu0 %v244
      %v284 = vpop.f32.mrf.mxu0
      %v285 = vadd.f32 0.0, %v284
      %286 = vdwg.mxu0
      %v287 = vld [vmem:[%s2] sm:$0xff]
      %v288 = vld [vmem:[%s2 + $0x8] sm:$0xff]
      %v289 = vld [vmem:[%s2 + $0x10] sm:$0xff]
      %v290 = vld [vmem:[%s2 + $0x18] sm:$0xff]
      %v292 = vsel %vm221, %v287, 0
      %v295 = vsel %vm221, %v288, 0
      %v298 = vsel %vm221, %v289, 0
      %v301 = vsel %vm221, %v290, 0
      %303 = vmatpush.msra.mxu0 0.0
      %304 = vmatpush.msra.mxu0 0.0
      %305 = vmatpush.msra.mxu0 0.0
      %306 = vmatpush.msra.mxu0 0.0
      %307 = vmatpush.msra.mxu0 0.0
      %308 = vmatpush.msra.mxu0 0.0
      %309 = vmatpush.msra.mxu0 0.0
      %310 = vmatpush.msra.mxu0 0.0
      %311 = vmatpush.msra.mxu0 0.0
      %312 = vmatpush.msra.mxu0 0.0
      %313 = vmatpush.msra.mxu0 0.0
      %314 = vmatpush.msra.mxu0 0.0
      %315 = vmatpush.msra.mxu0 0.0
      %316 = vmatpush.msra.mxu0 0.0
      %317 = vmatpush.msra.mxu0 %v267
      %318 = vmatpush.msra.mxu0 %v264
      %319 = vmatmul.f32.gmra.mxu0 %v292
      %v320 = vpop.f32.mrf.mxu0
      %v321 = vadd.f32 0.0, %v320
      %322 = vmatmul.f32.gmra.mxu0 %v295
      %v323 = vpop.f32.mrf.mxu0
      %v324 = vadd.f32 0.0, %v323
      %325 = vmatmul.f32.gmra.mxu0 %v298
      %v326 = vpop.f32.mrf.mxu0
      %v327 = vadd.f32 0.0, %v326
      %328 = vmatmul.f32.gmra.mxu0 %v301
      %v329 = vpop.f32.mrf.mxu0
      %v330 = vadd.f32 0.0, %v329
      %331 = vdwg.mxu0
      %vm332 = vcmask 261120
      %333 = vst.msk [vmem:[%s209] sm:$0xff] %vm332, %v321
      %334 = vst.msk [vmem:[%s209 + $0x8] sm:$0xff] %vm332, %v324
      %335 = vst.msk [vmem:[%s209 + $0x10] sm:$0xff] %vm332, %v327
      %336 = vst.msk [vmem:[%s209 + $0x18] sm:$0xff] %vm332, %v330
      %337 = vmatpush.msra.mxu0 0.0
      %338 = vmatpush.msra.mxu0 0.0
      %339 = vmatpush.msra.mxu0 0.0
      %340 = vmatpush.msra.mxu0 0.0
      %341 = vmatpush.msra.mxu0 0.0
      %342 = vmatpush.msra.mxu0 0.0
      %343 = vmatpush.msra.mxu0 0.0
      %344 = vmatpush.msra.mxu0 0.0
      %345 = vmatpush.msra.mxu0 0.0
      %346 = vmatpush.msra.mxu0 0.0
      %347 = vmatpush.msra.mxu0 0.0
      %348 = vmatpush.msra.mxu0 0.0
      %349 = vmatpush.msra.mxu0 0.0
      %350 = vmatpush.msra.mxu0 0.0
      %351 = vmatpush.msra.mxu0 %v273
      %352 = vmatpush.msra.mxu0 %v270
      %353 = vmatmul.f32.gmra.mxu0 %v292
      %v354 = vpop.f32.mrf.mxu0
      %v355 = vadd.f32 0.0, %v354
      %356 = vmatmul.f32.gmra.mxu0 %v295
      %v357 = vpop.f32.mrf.mxu0
      %v358 = vadd.f32 0.0, %v357
      %359 = vmatmul.f32.gmra.mxu0 %v298
      %v360 = vpop.f32.mrf.mxu0
      %v361 = vadd.f32 0.0, %v360
      %362 = vmatmul.f32.gmra.mxu0 %v301
      %v363 = vpop.f32.mrf.mxu0
      %v364 = vadd.f32 0.0, %v363
      %365 = vdwg.mxu0
      %366 = vst.msk [vmem:[%s209 + $0x20] sm:$0xff] %vm332, %v355
      %367 = vst.msk [vmem:[%s209 + $0x28] sm:$0xff] %vm332, %v358
      %368 = vst.msk [vmem:[%s209 + $0x30] sm:$0xff] %vm332, %v361
      %369 = vst.msk [vmem:[%s209 + $0x38] sm:$0xff] %vm332, %v364
      %370 = vmatpush.msra.mxu0 0.0
      %371 = vmatpush.msra.mxu0 0.0
      %372 = vmatpush.msra.mxu0 0.0
      %373 = vmatpush.msra.mxu0 0.0
      %374 = vmatpush.msra.mxu0 0.0
      %375 = vmatpush.msra.mxu0 0.0
      %376 = vmatpush.msra.mxu0 0.0
      %377 = vmatpush.msra.mxu0 0.0
      %378 = vmatpush.msra.mxu0 0.0
      %379 = vmatpush.msra.mxu0 0.0
      %380 = vmatpush.msra.mxu0 0.0
      %381 = vmatpush.msra.mxu0 0.0
      %382 = vmatpush.msra.mxu0 0.0
      %383 = vmatpush.msra.mxu0 0.0
      %384 = vmatpush.msra.mxu0 %v279
      %385 = vmatpush.msra.mxu0 %v276
      %386 = vmatmul.f32.gmra.mxu0 %v292
      %v387 = vpop.f32.mrf.mxu0
      %v388 = vadd.f32 0.0, %v387
      %389 = vmatmul.f32.gmra.mxu0 %v295
      %v390 = vpop.f32.mrf.mxu0
      %v391 = vadd.f32 0.0, %v390
      %392 = vmatmul.f32.gmra.mxu0 %v298
      %v393 = vpop.f32.mrf.mxu0
      %v394 = vadd.f32 0.0, %v393
      %395 = vmatmul.f32.gmra.mxu0 %v301
      %v396 = vpop.f32.mrf.mxu0
      %v397 = vadd.f32 0.0, %v396
      %398 = vdwg.mxu0
      %399 = vst.msk [vmem:[%s209 + $0x40] sm:$0xff] %vm332, %v388
      %400 = vst.msk [vmem:[%s209 + $0x48] sm:$0xff] %vm332, %v391
      %401 = vst.msk [vmem:[%s209 + $0x50] sm:$0xff] %vm332, %v394
      %402 = vst.msk [vmem:[%s209 + $0x58] sm:$0xff] %vm332, %v397
      %403 = vmatpush.msra.mxu0 0.0
      %404 = vmatpush.msra.mxu0 0.0
      %405 = vmatpush.msra.mxu0 0.0
      %406 = vmatpush.msra.mxu0 0.0
      %407 = vmatpush.msra.mxu0 0.0
      %408 = vmatpush.msra.mxu0 0.0
      %409 = vmatpush.msra.mxu0 0.0
      %410 = vmatpush.msra.mxu0 0.0
      %411 = vmatpush.msra.mxu0 0.0
      %412 = vmatpush.msra.mxu0 0.0
      %413 = vmatpush.msra.mxu0 0.0
      %414 = vmatpush.msra.mxu0 0.0
      %415 = vmatpush.msra.mxu0 0.0
      %416 = vmatpush.msra.mxu0 0.0
      %417 = vmatpush.msra.mxu0 %v285
      %418 = vmatpush.msra.mxu0 %v282
      %419 = vmatmul.f32.gmra.mxu0 %v292
      %v420 = vpop.f32.mrf.mxu0
      %v421 = vadd.f32 0.0, %v420
      %422 = vmatmul.f32.gmra.mxu0 %v295
      %v423 = vpop.f32.mrf.mxu0
      %v424 = vadd.f32 0.0, %v423
      %425 = vmatmul.f32.gmra.mxu0 %v298
      %v426 = vpop.f32.mrf.mxu0
      %v427 = vadd.f32 0.0, %v426
      %428 = vmatmul.f32.gmra.mxu0 %v301
      %v429 = vpop.f32.mrf.mxu0
      %v430 = vadd.f32 0.0, %v429
      %431 = vdwg.mxu0
      %432 = vst.msk [vmem:[%s209 + $0x60] sm:$0xff] %vm332, %v421
      %433 = vst.msk [vmem:[%s209 + $0x68] sm:$0xff] %vm332, %v424
      %434 = vst.msk [vmem:[%s209 + $0x70] sm:$0xff] %vm332, %v427
      %435 = vst.msk [vmem:[%s209 + $0x78] sm:$0xff] %vm332, %v430
      %s436 = smul.u32 16, %s18
      %p437 = scmp.lt.s32.totalorder %s436, 31
      %s438 = scalar_select %p437, %s436, 31
      %p439 = scmp.lt.s32.totalorder %s19, 0
      %s440 = scalar_select %p439, %s19, 0
      %s441 = sadd.s32 %s440, %s438
      %s442 = smul.addr %s441, 8
      %s443 = scalar_lea.vmem %s3, %s442
      // Predicated region
      $region33: #{tpu_custom_call.1} parent=31 // pred_check
        %p444 = pneg %p119
      $region34: #{tpu_custom_call.1} parent=31 // pred_check_branch
        %446 = sbr.rel (%p444) target = $region36
      $region35: #{tpu_custom_call.1} parent=31 // pred_region
        %s447 = smul.u32 16, %s18
      $region36: #{tpu_custom_call.1} parent=31 // pred_fallthru
        _
    $region32: #{tpu_custom_call.1} parent=5 // pred_fallthru
      _
    %p448 = scmp.le.s32.totalorder 2, %s9
    // Predicated region
    $region37: #{tpu_custom_call.1} parent=5 // pred_check
      %p449 = pneg %p448
    $region38: #{tpu_custom_call.1} parent=5 // pred_check_branch
      %451 = sbr.rel (%p449) target = $region40
    $region39: #{tpu_custom_call.1} parent=5 // pred_region
      %s452 = ssub.s32 %s9, 2
      // Predicated region
      $region41: #{tpu_custom_call.1} parent=39 // pred_check
        %p453 = pneg %p125
      $region42: #{tpu_custom_call.1} parent=39 // pred_check_branch
        %455 = sbr.rel (%p453) target = $region44
      $region43: #{tpu_custom_call.1} parent=39 // pred_region
        %s456 = smul.u32 16, %s20
        %p457 = scmp.lt.s32.totalorder %s456, 31
        %s458 = scalar_select %p457, %s456, 31
        %p459 = scmp.lt.s32.totalorder %s21, 0
        %s460 = scalar_select %p459, %s21, 0
        %s461 = sadd.s32 %s460, %s458
        %s462 = smul.addr %s461, 8
        %s463 = scalar_lea.vmem %s3, %s462
      $region44: #{tpu_custom_call.1} parent=39 // pred_fallthru
        _
    $region40: #{tpu_custom_call.1} parent=5 // pred_fallthru
      _
  $region6: #{tpu_custom_call.1} parent=0 // loop_footer
    %s13 = sadd.s32 1, %s9
  $region7: #{tpu_custom_call.1} parent=0 // loop_footer_branch
    %8 = sbr.rel target = $region3
  $region8: #{tpu_custom_call.1} parent=0 // loop_exit
    _

// kernel: tpu_custom_call.1
$region0: #{tpu_custom_call.1}
  #allocation0 [shape = 'u32[]', space=smem, size = 0x4, offset = 0x4, fixed_abs, tag = 'smem constant byte address 0x4 - core index']
  #allocation1 [shape = 'u32[72,128]{1,0:T(1,128)}', space=vmem, size = 0x9000, scoped, tag = 'internal scratch']
  %s0 = inlined_call_operand.vmem [shape: f32[128,16], index: 0, kind: input, shape index: {}]
  %s1 = inlined_call_operand.vmem [shape: f32[16,32], index: 1, kind: input, shape index: {}]
  %s2 = inlined_call_operand.vmem [shape: f32[32,16], index: 2, kind: input, shape index: {}]
  %s3 = inlined_call_operand.vmem [shape: f32[256,32], index: 3, kind: output, shape index: {}]
  %s4 = sld [smem:[#allocation0]]
  $region45: #{tpu_custom_call.1} parent=0
    _
  %s6 = ssub.s32 1, %s4
  %s7 = scalar_select 0, %s6, %s4
  loop: start=0, step=1, limit=4
  $region2: #{tpu_custom_call.1} parent=0 // loop_pre_header
    _
  $region3: #{tpu_custom_call.1} parent=0 // loop_header
    %s9 = sphi 0, %s13
    %p10 = scmp.ge.s32.totalorder %s9, 4
    %s16 = sphi 0, %s28
    %s17 = sphi 0, %s24
    %s18 = sphi 0, %s16
    %s19 = sphi 0, %s17
    %s20 = sphi 0, %s18
    %s21 = sphi 0, %s19
    %s31 = sphi 0, %s33
    %s34 = sphi 0, %s31
    %s35 = sphi 0, %s34
    %s51 = sphi 0, %s35
    %s57 = sphi 0, %s59
    %s60 = sphi 0, %s57
    %s61 = sphi 0, %s60
    %s77 = sphi 0, %s61
    %s81 = sphi 0, %s81
    %s83 = sphi 0, %s81
    %s84 = sphi 0, %s83
    %s98 = sphi 0, %s84
    %s106 = sphi 0, %s108
    %s109 = sphi 0, %s106
    %s110 = sphi 0, %s109
    %s126 = sphi 0, %s110
  $region4: #{tpu_custom_call.1} parent=0 // loop_header_branch
    %12 = sbr.rel (%p10) target = $region8
  $region5: #{tpu_custom_call.1} parent=0 // loop_body
    %s14 = ssub.s32 %s9, 1
    %s15 = ssub.s32 %s9, 2
    %s22 = sadd.s32 1, %s17
    %p23 = scmp.ge.s32.totalorder %s22, 1
    %s24 = scalar_select %p23, 0, %s22
    %s25 = sadd.s32 1, %s16
    %s26 = scalar_select %p23, %s25, %s16
    %p27 = scmp.ge.s32.totalorder %s26, 2
    %s28 = scalar_select %p27, 0, %s26
    %s29 = ssub.s32 %s16, %s28
    %p30 = scmp.eq.s32.totalorder %s29, 0
    %s32 = sadd.s32 %s31, 1
    %s33 = scalar_select %p30, %s31, %s32
    %p36 = pneg %p30
    %p37 = scmp.eq.s32.totalorder %s9, 1
    %p38 = por %p36, %p37
    %p39 = scmp.ne.s32.totalorder %s31, %s34
    %p40 = scmp.eq.s32.totalorder %s9, 0
    %p41 = por %p39, %p40
    %p42 = scmp.ne.s32.totalorder %s31, %s34
    %p43 = scmp.eq.s32.totalorder %s14, 1
    %p44 = por %p42, %p43
    %p45 = scmp.ne.s32.totalorder %s34, %s35
    %p46 = scmp.eq.s32.totalorder %s14, 0
    %p47 = por %p45, %p46
    %p48 = scmp.ne.s32.totalorder %s34, %s35
    %p49 = scmp.eq.s32.totalorder %s15, 1
    %p50 = por %p48, %p49
    %p52 = scmp.ne.s32.totalorder %s35, %s51
    %p53 = scmp.eq.s32.totalorder %s15, 0
    %p54 = por %p52, %p53
    %s55 = ssub.s32 %s17, %s24
    %p56 = scmp.eq.s32.totalorder %s55, 0
    %s58 = sadd.s32 %s57, 1
    %s59 = scalar_select %p56, %s57, %s58
    %p62 = pneg %p56
    %p63 = scmp.eq.s32.totalorder %s9, 1
    %p64 = por %p62, %p63
    %p65 = scmp.ne.s32.totalorder %s57, %s60
    %p66 = scmp.eq.s32.totalorder %s9, 0
    %p67 = por %p65, %p66
    %p68 = scmp.ne.s32.totalorder %s57, %s60
    %p69 = scmp.eq.s32.totalorder %s14, 1
    %p70 = por %p68, %p69
    %p71 = scmp.ne.s32.totalorder %s60, %s61
    %p72 = scmp.eq.s32.totalorder %s14, 0
    %p73 = por %p71, %p72
    %p74 = scmp.ne.s32.totalorder %s60, %s61
    %p75 = scmp.eq.s32.totalorder %s15, 1
    %p76 = por %p74, %p75
    %p78 = scmp.ne.s32.totalorder %s61, %s77
    %p79 = scmp.eq.s32.totalorder %s15, 0
    %p80 = por %p78, %p79
    %s82 = sadd.s32 %s81, 1
    %p85 = scmp.eq.s32.totalorder %s9, 1
    %p86 = scmp.ne.s32.totalorder %s81, %s83
    %p87 = scmp.eq.s32.totalorder %s9, 0
    %p88 = por %p86, %p87
    %p89 = scmp.ne.s32.totalorder %s81, %s83
    %p90 = scmp.eq.s32.totalorder %s14, 1
    %p91 = por %p89, %p90
    %p92 = scmp.ne.s32.totalorder %s83, %s84
    %p93 = scmp.eq.s32.totalorder %s14, 0
    %p94 = por %p92, %p93
    %p95 = scmp.ne.s32.totalorder %s83, %s84
    %p96 = scmp.eq.s32.totalorder %s15, 1
    %p97 = por %p95, %p96
    %p99 = scmp.ne.s32.totalorder %s84, %s98
    %p100 = scmp.eq.s32.totalorder %s15, 0
    %p101 = por %p99, %p100
    %s102 = ssub.s32 %s16, %s28
    %s103 = ssub.s32 %s17, %s24
    %s104 = sor.u32 %s102, %s103
    %p105 = scmp.eq.s32.totalorder %s104, 0
    %s107 = sadd.s32 %s106, 1
    %s108 = scalar_select %p105, %s106, %s107
    %p111 = pneg %p105
    %p112 = scmp.eq.s32.totalorder %s9, 1
    %p113 = por %p111, %p112
    %p114 = scmp.ne.s32.totalorder %s106, %s109
    %p115 = scmp.eq.s32.totalorder %s9, 0
    %p116 = por %p114, %p115
    %p117 = scmp.ne.s32.totalorder %s106, %s109
    %p118 = scmp.eq.s32.totalorder %s14, 1
    %p119 = por %p117, %p118
    %p120 = scmp.ne.s32.totalorder %s109, %s110
    %p121 = scmp.eq.s32.totalorder %s14, 0
    %p122 = por %p120, %p121
    %p123 = scmp.ne.s32.totalorder %s109, %s110
    %p124 = scmp.eq.s32.totalorder %s15, 1
    %p125 = por %p123, %p124
    %p127 = scmp.ne.s32.totalorder %s110, %s126
    %p128 = scmp.eq.s32.totalorder %s15, 0
    %p129 = por %p127, %p128
    %p130 = scmp.le.s32.totalorder 1, %s9
    %p131 = scmp.lt.s32.totalorder %s9, 3
    %p132 = pnand %p130, %p131
    %p133 = pneg %p132
    // Predicated region
    $region9: #{tpu_custom_call.1} parent=5 // pred_check
      _
    $region10: #{tpu_custom_call.1} parent=5 // pred_check_branch
      %135 = sbr.rel (%p132) target = $region12
    $region11: #{tpu_custom_call.1} parent=5 // pred_region
      %s136 = ssub.s32 %s9, 1
      // Predicated region
      $region13: #{tpu_custom_call.1} parent=11 // pred_check
        %p137 = pneg %p73
      $region14: #{tpu_custom_call.1} parent=11 // pred_check_branch
        %139 = sbr.rel (%p137) target = $region16
      $region15: #{tpu_custom_call.1} parent=11 // pred_region
        %p140 = scmp.lt.s32.totalorder %s19, 0
        %s141 = scalar_select %p140, %s19, 0
        %s142 = smul.addr %s141, 8
        %s143 = scalar_lea.vmem %s1, %s142
      $region16: #{tpu_custom_call.1} parent=11 // pred_fallthru
        _
      // Predicated region
      $region17: #{tpu_custom_call.1} parent=11 // pred_check
        %p144 = pneg %p94
      $region18: #{tpu_custom_call.1} parent=11 // pred_check_branch
        %146 = sbr.rel (%p144) target = $region20
      $region19: #{tpu_custom_call.1} parent=11 // pred_region
        _
      $region20: #{tpu_custom_call.1} parent=11 // pred_fallthru
        _
    $region12: #{tpu_custom_call.1} parent=5 // pred_fallthru
      _
    %p147 = scmp.lt.s32.totalorder %s9, 2
    // Predicated region
    $region21: #{tpu_custom_call.1} parent=5 // pred_check
      %p148 = pneg %p147
    $region22: #{tpu_custom_call.1} parent=5 // pred_check_branch
      %150 = sbr.rel (%p148) target = $region24
    $region23: #{tpu_custom_call.1} parent=5 // pred_region
      // Predicated region
      $region25: #{tpu_custom_call.1} parent=23 // pred_check
        %p151 = pneg %p41
      $region26: #{tpu_custom_call.1} parent=23 // pred_check_branch
        %153 = sbr.rel (%p151) target = $region28
      $region27: #{tpu_custom_call.1} parent=23 // pred_region
        %s154 = smul.u32 8, %s16
        %p155 = scmp.lt.s32.totalorder %s154, 15
        %s156 = scalar_select %p155, %s154, 15
        %s157 = smul.addr %s156, 8
        %s158 = scalar_lea.vmem %s0, %s157
        %s159 = smul.u32 8, %s16
      $region28: #{tpu_custom_call.1} parent=23 // pred_fallthru
        _
    $region24: #{tpu_custom_call.1} parent=5 // pred_fallthru
      _
    %p160 = scmp.le.s32.totalorder 1, %s9
    %p161 = scmp.lt.s32.totalorder %s9, 3
    %p162 = pnand %p160, %p161
    %p163 = pneg %p162
    // Predicated region
    $region29: #{tpu_custom_call.1} parent=5 // pred_check
      _
    $region30: #{tpu_custom_call.1} parent=5 // pred_check_branch
      %165 = sbr.rel (%p162) target = $region32
    $region31: #{tpu_custom_call.1} parent=5 // pred_region
      %s166 = ssub.s32 %s9, 1
      %s167 = smul.u32 8, %s18
      %p168 = scmp.lt.s32.totalorder %s167, 15
      %s169 = scalar_select %p168, %s167, 15
      %s170 = smul.addr %s169, 8
      %s171 = scalar_lea.vmem %s0, %s170
      %p172 = pneg %p47
      %p173 = pneg %p44
      %p174 = scmp.lt.s32.totalorder %s19, 0
      %s175 = scalar_select %p174, %s19, 0
      %s176 = smul.addr %s175, 8
      %s177 = scalar_lea.vmem %s1, %s176
      %p178 = pneg %p73
      %p179 = pneg %p70
      %p180 = pneg %p94
      %p181 = pneg %p91
      %p182 = pneg %p122
      %p183 = pneg %p119
      %s184 = smul.u32 16, %s18
      %p185 = scmp.lt.s32.totalorder %s184, 31
      %s186 = scalar_select %p185, %s184, 31
      %p187 = scmp.lt.s32.totalorder %s19, 0
      %s188 = scalar_select %p187, %s19, 0
      %s189 = sadd.s32 %s188, %s186
      %s190 = smul.addr %s189, 8
      %s191 = scalar_lea.vmem %s3, %s190
      %s192 = smul.u32 8, %s18
      %p193 = scmp.lt.s32.totalorder %s192, 15
      %s194 = scalar_select %p193, %s192, 15
      %s195 = smul.addr %s194, 8
      %s196 = scalar_lea.vmem %s0, %s195
      %s197 = smul.u32 8, %s18
      %p198 = scmp.lt.s32.totalorder %s19, 0
      %s199 = scalar_select %p198, %s19, 0
      %s200 = smul.addr %s199, 8
      %s201 = scalar_lea.vmem %s1, %s200
      %s202 = smul.u32 16, %s18
      %p203 = scmp.lt.s32.totalorder %s202, 31
      %s204 = scalar_select %p203, %s202, 31
      %p205 = scmp.lt.s32.totalorder %s19, 0
      %s206 = scalar_select %p205, %s19, 0
      %s207 = sadd.s32 %s206, %s204
      %s208 = smul.addr %s207, 8
      %s209 = scalar_lea.vmem %s3, %s208
      %s210 = smul.u32 16, %s18
      %v211 = vld [vmem:[%s196] sm:$0xff]
      %v212 = vld [vmem:[%s196 + $0x8] sm:$0xff]
      %v213 = vld [vmem:[%s196 + $0x10] sm:$0xff]
      %v214 = vld [vmem:[%s196 + $0x18] sm:$0xff]
      %v215 = vld [vmem:[%s196 + $0x20] sm:$0xff]
      %v216 = vld [vmem:[%s196 + $0x28] sm:$0xff]
      %v217 = vld [vmem:[%s196 + $0x30] sm:$0xff]
      %v218 = vld [vmem:[%s196 + $0x38] sm:$0xff]
      %v219 = vld [vmem:[%s201] sm:$0xff]
      %v220 = vld [vmem:[%s201 + $0x8] sm:$0xff]
      %vm221 = vcmask 130048
      %v223 = vsel %vm221, %v211, 0
      %v226 = vsel %vm221, %v212, 0
      %v229 = vsel %vm221, %v213, 0
      %v232 = vsel %vm221, %v214, 0
      %v235 = vsel %vm221, %v215, 0
      %v238 = vsel %vm221, %v216, 0
      %v241 = vsel %vm221, %v217, 0
      %v244 = vsel %vm221, %v218, 0
      %246 = vmatpush.msra.mxu0 0.0
      %247 = vmatpush.msra.mxu0 0.0
      %248 = vmatpush.msra.mxu0 0.0
      %249 = vmatpush.msra.mxu0 0.0
      %250 = vmatpush.msra.mxu0 0.0
      %251 = vmatpush.msra.mxu0 0.0
      %252 = vmatpush.msra.mxu0 0.0
      %253 = vmatpush.msra.mxu0 0.0
      %254 = vmatpush.msra.mxu0 0.0
      %255 = vmatpush.msra.mxu0 0.0
      %256 = vmatpush.msra.mxu0 0.0
      %257 = vmatpush.msra.mxu0 0.0
      %258 = vmatpush.msra.mxu0 0.0
      %259 = vmatpush.msra.mxu0 0.0
      %260 = vmatpush.msra.mxu0 %v220
      %261 = vmatpush.msra.mxu0 %v219
      %262 = vmatmul.f32.gmra.mxu0 %v223
      %v263 = vpop.f32.mrf.mxu0
      %v264 = vadd.f32 0.0, %v263
      %265 = vmatmul.f32.gmra.mxu0 %v226
      %v266 = vpop.f32.mrf.mxu0
      %v267 = vadd.f32 0.0, %v266
      %268 = vmatmul.f32.gmra.mxu0 %v229
      %v269 = vpop.f32.mrf.mxu0
      %v270 = vadd.f32 0.0, %v269
      %271 = vmatmul.f32.gmra.mxu0 %v232
      %v272 = vpop.f32.mrf.mxu0
      %v273 = vadd.f32 0.0, %v272
      %274 = vmatmul.f32.gmra.mxu0 %v235
      %v275 = vpop.f32.mrf.mxu0
      %v276 = vadd.f32 0.0, %v275
      %277 = vmatmul.f32.gmra.mxu0 %v238
      %v278 = vpop.f32.mrf.mxu0
      %v279 = vadd.f32 0.0, %v278
      %280 = vmatmul.f32.gmra.mxu0 %v241
      %v281 = vpop.f32.mrf.mxu0
      %v282 = vadd.f32 0.0, %v281
      %283 = vmatmul.f32.gmra.mxu0 %v244
      %v284 = vpop.f32.mrf.mxu0
      %v285 = vadd.f32 0.0, %v284
      %286 = vdwg.mxu0
      %v287 = vld [vmem:[%s2] sm:$0xff]
      %v288 = vld [vmem:[%s2 + $0x8] sm:$0xff]
      %v289 = vld [vmem:[%s2 + $0x10] sm:$0xff]
      %v290 = vld [vmem:[%s2 + $0x18] sm:$0xff]
      %v292 = vsel %vm221, %v287, 0
      %v295 = vsel %vm221, %v288, 0
      %v298 = vsel %vm221, %v289, 0
      %v301 = vsel %vm221, %v290, 0
      %303 = vmatpush.msra.mxu0 0.0
      %304 = vmatpush.msra.mxu0 0.0
      %305 = vmatpush.msra.mxu0 0.0
      %306 = vmatpush.msra.mxu0 0.0
      %307 = vmatpush.msra.mxu0 0.0
      %308 = vmatpush.msra.mxu0 0.0
      %309 = vmatpush.msra.mxu0 0.0
      %310 = vmatpush.msra.mxu0 0.0
      %311 = vmatpush.msra.mxu0 0.0
      %312 = vmatpush.msra.mxu0 0.0
      %313 = vmatpush.msra.mxu0 0.0
      %314 = vmatpush.msra.mxu0 0.0
      %315 = vmatpush.msra.mxu0 0.0
      %316 = vmatpush.msra.mxu0 0.0
      %317 = vmatpush.msra.mxu0 %v267
      %318 = vmatpush.msra.mxu0 %v264
      %319 = vmatmul.f32.gmra.mxu0 %v292
      %v320 = vpop.f32.mrf.mxu0
      %v321 = vadd.f32 0.0, %v320
      %322 = vmatmul.f32.gmra.mxu0 %v295
      %v323 = vpop.f32.mrf.mxu0
      %v324 = vadd.f32 0.0, %v323
      %325 = vmatmul.f32.gmra.mxu0 %v298
      %v326 = vpop.f32.mrf.mxu0
      %v327 = vadd.f32 0.0, %v326
      %328 = vmatmul.f32.gmra.mxu0 %v301
      %v329 = vpop.f32.mrf.mxu0
      %v330 = vadd.f32 0.0, %v329
      %331 = vdwg.mxu0
      %vm332 = vcmask 261120
      %333 = vst.msk [vmem:[%s209] sm:$0xff] %vm332, %v321
      %334 = vst.msk [vmem:[%s209 + $0x8] sm:$0xff] %vm332, %v324
      %335 = vst.msk [vmem:[%s209 + $0x10] sm:$0xff] %vm332, %v327
      %336 = vst.msk [vmem:[%s209 + $0x18] sm:$0xff] %vm332, %v330
      %337 = vmatpush.msra.mxu0 0.0
      %338 = vmatpush.msra.mxu0 0.0
      %339 = vmatpush.msra.mxu0 0.0
      %340 = vmatpush.msra.mxu0 0.0
      %341 = vmatpush.msra.mxu0 0.0
      %342 = vmatpush.msra.mxu0 0.0
      %343 = vmatpush.msra.mxu0 0.0
      %344 = vmatpush.msra.mxu0 0.0
      %345 = vmatpush.msra.mxu0 0.0
      %346 = vmatpush.msra.mxu0 0.0
      %347 = vmatpush.msra.mxu0 0.0
      %348 = vmatpush.msra.mxu0 0.0
      %349 = vmatpush.msra.mxu0 0.0
      %350 = vmatpush.msra.mxu0 0.0
      %351 = vmatpush.msra.mxu0 %v273
      %352 = vmatpush.msra.mxu0 %v270
      %353 = vmatmul.f32.gmra.mxu0 %v292
      %v354 = vpop.f32.mrf.mxu0
      %v355 = vadd.f32 0.0, %v354
      %356 = vmatmul.f32.gmra.mxu0 %v295
      %v357 = vpop.f32.mrf.mxu0
      %v358 = vadd.f32 0.0, %v357
      %359 = vmatmul.f32.gmra.mxu0 %v298
      %v360 = vpop.f32.mrf.mxu0
      %v361 = vadd.f32 0.0, %v360
      %362 = vmatmul.f32.gmra.mxu0 %v301
      %v363 = vpop.f32.mrf.mxu0
      %v364 = vadd.f32 0.0, %v363
      %365 = vdwg.mxu0
      %366 = vst.msk [vmem:[%s209 + $0x20] sm:$0xff] %vm332, %v355
      %367 = vst.msk [vmem:[%s209 + $0x28] sm:$0xff] %vm332, %v358
      %368 = vst.msk [vmem:[%s209 + $0x30] sm:$0xff] %vm332, %v361
      %369 = vst.msk [vmem:[%s209 + $0x38] sm:$0xff] %vm332, %v364
      %370 = vmatpush.msra.mxu0 0.0
      %371 = vmatpush.msra.mxu0 0.0
      %372 = vmatpush.msra.mxu0 0.0
      %373 = vmatpush.msra.mxu0 0.0
      %374 = vmatpush.msra.mxu0 0.0
      %375 = vmatpush.msra.mxu0 0.0
      %376 = vmatpush.msra.mxu0 0.0
      %377 = vmatpush.msra.mxu0 0.0
      %378 = vmatpush.msra.mxu0 0.0
      %379 = vmatpush.msra.mxu0 0.0
      %380 = vmatpush.msra.mxu0 0.0
      %381 = vmatpush.msra.mxu0 0.0
      %382 = vmatpush.msra.mxu0 0.0
      %383 = vmatpush.msra.mxu0 0.0
      %384 = vmatpush.msra.mxu0 %v279
      %385 = vmatpush.msra.mxu0 %v276
      %386 = vmatmul.f32.gmra.mxu0 %v292
      %v387 = vpop.f32.mrf.mxu0
      %v388 = vadd.f32 0.0, %v387
      %389 = vmatmul.f32.gmra.mxu0 %v295
      %v390 = vpop.f32.mrf.mxu0
      %v391 = vadd.f32 0.0, %v390
      %392 = vmatmul.f32.gmra.mxu0 %v298
      %v393 = vpop.f32.mrf.mxu0
      %v394 = vadd.f32 0.0, %v393
      %395 = vmatmul.f32.gmra.mxu0 %v301
      %v396 = vpop.f32.mrf.mxu0
      %v397 = vadd.f32 0.0, %v396
      %398 = vdwg.mxu0
      %399 = vst.msk [vmem:[%s209 + $0x40] sm:$0xff] %vm332, %v388
      %400 = vst.msk [vmem:[%s209 + $0x48] sm:$0xff] %vm332, %v391
      %401 = vst.msk [vmem:[%s209 + $0x50] sm:$0xff] %vm332, %v394
      %402 = vst.msk [vmem:[%s209 + $0x58] sm:$0xff] %vm332, %v397
      %403 = vmatpush.msra.mxu0 0.0
      %404 = vmatpush.msra.mxu0 0.0
      %405 = vmatpush.msra.mxu0 0.0
      %406 = vmatpush.msra.mxu0 0.0
      %407 = vmatpush.msra.mxu0 0.0
      %408 = vmatpush.msra.mxu0 0.0
      %409 = vmatpush.msra.mxu0 0.0
      %410 = vmatpush.msra.mxu0 0.0
      %411 = vmatpush.msra.mxu0 0.0
      %412 = vmatpush.msra.mxu0 0.0
      %413 = vmatpush.msra.mxu0 0.0
      %414 = vmatpush.msra.mxu0 0.0
      %415 = vmatpush.msra.mxu0 0.0
      %416 = vmatpush.msra.mxu0 0.0
      %417 = vmatpush.msra.mxu0 %v285
      %418 = vmatpush.msra.mxu0 %v282
      %419 = vmatmul.f32.gmra.mxu0 %v292
      %v420 = vpop.f32.mrf.mxu0
      %v421 = vadd.f32 0.0, %v420
      %422 = vmatmul.f32.gmra.mxu0 %v295
      %v423 = vpop.f32.mrf.mxu0
      %v424 = vadd.f32 0.0, %v423
      %425 = vmatmul.f32.gmra.mxu0 %v298
      %v426 = vpop.f32.mrf.mxu0
      %v427 = vadd.f32 0.0, %v426
      %428 = vmatmul.f32.gmra.mxu0 %v301
      %v429 = vpop.f32.mrf.mxu0
      %v430 = vadd.f32 0.0, %v429
      %431 = vdwg.mxu0
      %432 = vst.msk [vmem:[%s209 + $0x60] sm:$0xff] %vm332, %v421
      %433 = vst.msk [vmem:[%s209 + $0x68] sm:$0xff] %vm332, %v424
      %434 = vst.msk [vmem:[%s209 + $0x70] sm:$0xff] %vm332, %v427
      %435 = vst.msk [vmem:[%s209 + $0x78] sm:$0xff] %vm332, %v430
      %s436 = smul.u32 16, %s18
      %p437 = scmp.lt.s32.totalorder %s436, 31
      %s438 = scalar_select %p437, %s436, 31
      %p439 = scmp.lt.s32.totalorder %s19, 0
      %s440 = scalar_select %p439, %s19, 0
      %s441 = sadd.s32 %s440, %s438
      %s442 = smul.addr %s441, 8
      %s443 = scalar_lea.vmem %s3, %s442
      // Predicated region
      $region33: #{tpu_custom_call.1} parent=31 // pred_check
        %p444 = pneg %p119
      $region34: #{tpu_custom_call.1} parent=31 // pred_check_branch
        %446 = sbr.rel (%p444) target = $region36
      $region35: #{tpu_custom_call.1} parent=31 // pred_region
        %s447 = smul.u32 16, %s18
      $region36: #{tpu_custom_call.1} parent=31 // pred_fallthru
        _
    $region32: #{tpu_custom_call.1} parent=5 // pred_fallthru
      _
    %p448 = scmp.le.s32.totalorder 2, %s9
    // Predicated region
    $region37: #{tpu_custom_call.1} parent=5 // pred_check
      %p449 = pneg %p448
    $region38: #{tpu_custom_call.1} parent=5 // pred_check_branch
      %451 = sbr.rel (%p449) target = $region40
    $region39: #{tpu_custom_call.1} parent=5 // pred_region
      %s452 = ssub.s32 %s9, 2
      // Predicated region
      $region41: #{tpu_custom_call.1} parent=39 // pred_check
        %p453 = pneg %p125
      $region42: #{tpu_custom_call.1} parent=39 // pred_check_branch
        %455 = sbr.rel (%p453) target = $region44
      $region43: #{tpu_custom_call.1} parent=39 // pred_region
        %s456 = smul.u32 16, %s20
        %p457 = scmp.lt.s32.totalorder %s456, 31
        %s458 = scalar_select %p457, %s456, 31
        %p459 = scmp.lt.s32.totalorder %s21, 0
        %s460 = scalar_select %p459, %s21, 0
        %s461 = sadd.s32 %s460, %s458
        %s462 = smul.addr %s461, 8
        %s463 = scalar_lea.vmem %s3, %s462
      $region44: #{tpu_custom_call.1} parent=39 // pred_fallthru
        _
    $region40: #{tpu_custom_call.1} parent=5 // pred_fallthru
      _
  $region6: #{tpu_custom_call.1} parent=0 // loop_footer
    %s13 = sadd.s32 1, %s9
  $region7: #{tpu_custom_call.1} parent=0 // loop_footer_branch
    %8 = sbr.rel target = $region3
  $region8: #{tpu_custom_call.1} parent=0 // loop_exit
    _

</llo_original>
